<compile_context>
chip_gen: v7x
topology: tpu7x:2x2x1
jax: 0.10.0
libtpu: 0.0.40
codegen_flags: <defaults>
</compile_context>

<pallas_src>
import functools

import jax
import jax.numpy as jnp
from jax.experimental import pallas as pl
from jax.experimental.pallas import tpu as pltpu


def _maxpool_stride1_kernel(H, W, x_ref, o_ref):
    # x_ref / o_ref: (block_bc, H, W) in the input's native dtype.
    # ---- column pass: o[:, :, j] = max(x[:, :, j], x[:, :, min(j+1, W-1)]) ----
    if W > 1:
        left = x_ref[:, :, pl.ds(0, W - 1)]
        right = x_ref[:, :, pl.ds(1, W - 1)]
        o_ref[:, :, pl.ds(0, W - 1)] = jnp.maximum(left, right)
        # last column: replicate padding -> just the column itself
        o_ref[:, :, pl.ds(W - 1, 1)] = x_ref[:, :, pl.ds(W - 1, 1)]
    else:
        o_ref[...] = x_ref[...]

    # ---- row pass (in place on o_ref):
    #      o[:, i, :] = max(o[:, i, :], o[:, min(i+1, H-1), :]) ----
    if H > 1:
        top = o_ref[:, pl.ds(0, H - 1), :]
        bot = o_ref[:, pl.ds(1, H - 1), :]
        o_ref[:, pl.ds(0, H - 1), :] = jnp.maximum(top, bot)
        # last row already holds its own column-max (replicate padding): done.


def _largest_divisor_leq(n, cap):
    cap = max(1, min(n, cap))
    for d in range(cap, 0, -1):
        if n % d == 0:
            return d
    return 1


def maxpool_stride1_pallas(x, *, vmem_block_bytes=2 * 1024 * 1024):
    """Equivalent of F.max_pool2d(F.pad(x, (0,1,0,1), mode='replicate'), 2, stride=1)."""
    N, C, H, W = x.shape
    BC = N * C
    x2 = x.reshape(BC, H, W)

    plane_bytes = H * W * x.dtype.itemsize
    vmem_cap_rows = max(1, vmem_block_bytes // max(1, plane_bytes))
    # Keep at least 2 grid steps when possible so the "parallel" axis can be
    # split across TensorCores (v7x megacore).
    megacore_cap = max(1, BC // 2) if BC > 1 else 1
    block_bc = _largest_divisor_leq(BC, min(vmem_cap_rows, megacore_cap))
    grid = (BC // block_bc,)

    spec = pl.BlockSpec((block_bc, H, W), lambda i: (i, 0, 0))
    kern = functools.partial(_maxpool_stride1_kernel, H, W)

    out = pl.pallas_call(
        kern,
        grid=grid,
        in_specs=[spec],
        out_specs=spec,
        out_shape=jax.ShapeDtypeStruct((BC, H, W), x.dtype),
        compiler_params=pltpu.CompilerParams(
            dimension_semantics=("parallel",)),
    )(x2)
    return out.reshape(N, C, H, W)


if __name__ == "__main__":
    key = jax.random.PRNGKey(0)
    N, C, H, W = 2, 4, 16, 16
    x = jax.random.normal(key, (N, C, H, W), jnp.float32)

    y = maxpool_stride1_pallas(x)
    y = jax.block_until_ready(y)

    # Pure-JAX reference: replicate-pad right/bottom by 1, 2x2 max, stride 1.
    xp = jnp.pad(x, ((0, 0), (0, 0), (0, 1), (0, 1)), mode="edge")
    ref = jnp.maximum(
        jnp.maximum(xp[:, :, :H, :W], xp[:, :, :H, 1:W + 1]),
        jnp.maximum(xp[:, :, 1:H + 1, :W], xp[:, :, 1:H + 1, 1:W + 1]))

    assert y.shape == x.shape, f"bad shape {y.shape}"
    assert bool(jnp.array_equal(y, ref)), "mismatch vs reference"

    print("KERNEL_OK")
</pallas_src>

<mosaic_0001>
module attributes {stable_mosaic.version = 11 : i64} {
  func.func @_maxpool_stride1_kernel(%arg0: i32, %arg1: memref<4x16x16xf32, #tpu.memory_space<vmem>>, %arg2: memref<4x16x16xf32, #tpu.memory_space<vmem>>) attributes {dimension_semantics = [#tpu.dimension_semantics<parallel>], iteration_bounds = array<i64: 2>, scalar_prefetch = 0 : i64, scratch_operands = 0 : i64, tpu.core_type = #tpu.core_type<tc>, window_params = [{transform_indices = @transform_0, window_bounds = array<i64: 4, 16, 16>}, {transform_indices = @transform_1, window_bounds = array<i64: 4, 16, 16>}]} {
    %c0 = arith.constant 0 : index
    %c0_0 = arith.constant 0 : index
    %c0_1 = arith.constant 0 : index
    %0 = vector.load %arg1[%c0, %c0_0, %c0_1] : memref<4x16x16xf32, #tpu.memory_space<vmem>>, vector<4x16x15xf32>
    %c0_2 = arith.constant 0 : index
    %c0_3 = arith.constant 0 : index
    %c1 = arith.constant 1 : index
    %1 = vector.load %arg1[%c0_2, %c0_3, %c1] : memref<4x16x16xf32, #tpu.memory_space<vmem>>, vector<4x16x15xf32>
    %2 = arith.maximumf %0, %1 : vector<4x16x15xf32>
    %c0_4 = arith.constant 0 : index
    %c0_5 = arith.constant 0 : index
    %c0_6 = arith.constant 0 : index
    %3 = vector.load %arg2[%c0_4, %c0_5, %c0_6] : memref<4x16x16xf32, #tpu.memory_space<vmem>>, vector<4x16x15xf32>
    tpu.vector_store %arg2[%c0_4, %c0_5, %c0_6], %2 {strides = array<i32>} : memref<4x16x16xf32, #tpu.memory_space<vmem>>, vector<4x16x15xf32>,
    %c0_7 = arith.constant 0 : index
    %c0_8 = arith.constant 0 : index
    %c15 = arith.constant 15 : index
    %4 = vector.load %arg1[%c0_7, %c0_8, %c15] : memref<4x16x16xf32, #tpu.memory_space<vmem>>, vector<4x16x1xf32>
    %c0_9 = arith.constant 0 : index
    %c0_10 = arith.constant 0 : index
    %c15_11 = arith.constant 15 : index
    %5 = vector.load %arg2[%c0_9, %c0_10, %c15_11] : memref<4x16x16xf32, #tpu.memory_space<vmem>>, vector<4x16x1xf32>
    tpu.vector_store %arg2[%c0_9, %c0_10, %c15_11], %4 {strides = array<i32>} : memref<4x16x16xf32, #tpu.memory_space<vmem>>, vector<4x16x1xf32>,
    %c0_12 = arith.constant 0 : index
    %c0_13 = arith.constant 0 : index
    %c0_14 = arith.constant 0 : index
    %6 = vector.load %arg2[%c0_12, %c0_13, %c0_14] : memref<4x16x16xf32, #tpu.memory_space<vmem>>, vector<4x15x16xf32>
    %c0_15 = arith.constant 0 : index
    %c1_16 = arith.constant 1 : index
    %c0_17 = arith.constant 0 : index
    %7 = vector.load %arg2[%c0_15, %c1_16, %c0_17] : memref<4x16x16xf32, #tpu.memory_space<vmem>>, vector<4x15x16xf32>
    %8 = arith.maximumf %6, %7 : vector<4x15x16xf32>
    %c0_18 = arith.constant 0 : index
    %c0_19 = arith.constant 0 : index
    %c0_20 = arith.constant 0 : index
    %9 = vector.load %arg2[%c0_18, %c0_19, %c0_20] : memref<4x16x16xf32, #tpu.memory_space<vmem>>, vector<4x15x16xf32>
    tpu.vector_store %arg2[%c0_18, %c0_19, %c0_20], %8 {strides = array<i32>} : memref<4x16x16xf32, #tpu.memory_space<vmem>>, vector<4x15x16xf32>,
    return
  }
  func.func @transform_0(%arg0: i32) -> (i32, i32, i32) {
    %c0_i32 = arith.constant 0 : i32
    %c0_i32_0 = arith.constant 0 : i32
    %c0_i32_1 = arith.constant 0 : i32
    return %arg0, %c0_i32, %c0_i32_0 : i32, i32, i32
  }
  func.func @transform_1(%arg0: i32) -> (i32, i32, i32) {
    %c0_i32 = arith.constant 0 : i32
    %c0_i32_0 = arith.constant 0 : i32
    %c0_i32_1 = arith.constant 0 : i32
    return %arg0, %c0_i32, %c0_i32_0 : i32, i32, i32
  }
}

</mosaic_0001>

<llo_original>
// kernel: tpu_custom_call.1
$region0: #{tpu_custom_call.1}
  #allocation0 [shape = 'u32[]', space=smem, size = 0x4, offset = 0x4, fixed_abs, tag = 'smem constant byte address 0x4 - core index']
  #allocation1 [shape = 'u32[144,128]{1,0:T(1,128)}', space=vmem, size = 0x12000, scoped, tag = 'internal scratch']
  %s0 = inlined_call_operand.hbm [shape: f32[8,16,16], index: 0, kind: input, shape index: {}]
  %s1 = inlined_call_operand.hbm [shape: f32[8,16,16], index: 1, kind: output, shape index: {}]
  %s2 = sld [smem:[#allocation0]]
  $region41: #{tpu_custom_call.1} parent=0
    _
  %s4 = ssub.s32 1, %s2
  %s5 = scalar_select 0, %s4, %s2
  $region1: #{tpu_custom_call.1} parent=0
    #allocation2 [shape = 'u8[65536]{0}', space=vmem, size = 0x10000, scoped, tag = 'input window, operand 0']
    #allocation3 [shape = 's32[2]{0}', space=sflag, size = 0x8, scoped, tag = 'scoped memory for tpu_custom_call.1']
    #allocation4 [shape = 's32[2]{0}', space=sflag, size = 0x8, scoped, tag = 'scoped memory for tpu_custom_call.1']
    #allocation5 [shape = 'u8[65536]{0}', space=vmem, size = 0x10000, scoped, tag = 'output window, operand 0']
    %6 = vsyncpa [#allocation3], 0
    %s7 = scalar_lea.sflag [#allocation3], 1
    %8 = vsyncpa %s7, 0
    %9 = vsyncpa [#allocation4], 0
    %s10 = scalar_lea.sflag [#allocation4], 1
    %11 = vsyncpa %s10, 0
    loop: start=0, step=1, limit=4
    $region2: #{tpu_custom_call.1} parent=1 // loop_pre_header
      _
    $region3: #{tpu_custom_call.1} parent=1 // loop_header
      %s13 = sphi 0, %s17
      %p14 = scmp.ge.s32.totalorder %s13, 4
      %s23 = sphi 0, %s25
      %s26 = sphi 0, %s23
      %s27 = sphi 0, %s26
      %s43 = sphi 0, %s27
      %s49 = sphi 0, %s51
      %s52 = sphi 0, %s49
      %s53 = sphi 0, %s52
      %s69 = sphi 0, %s53
    $region4: #{tpu_custom_call.1} parent=1 // loop_header_branch
      %16 = sbr.rel (%p14) target = $region8
    $region5: #{tpu_custom_call.1} parent=1 // loop_body
      %s18 = ssub.s32 %s13, 1
      %s19 = ssub.s32 %s13, 2
      %s20 = sadd.s32 %s13, 1
      %s21 = ssub.s32 %s13, %s20
      %p22 = scmp.eq.s32.totalorder %s21, 0
      %s24 = sadd.s32 %s23, 1
      %s25 = scalar_select %p22, %s23, %s24
      %p28 = pneg %p22
      %p29 = scmp.eq.s32.totalorder %s13, 1
      %p30 = por %p28, %p29
      %p31 = scmp.ne.s32.totalorder %s23, %s26
      %p32 = scmp.eq.s32.totalorder %s13, 0
      %p33 = por %p31, %p32
      %p34 = scmp.ne.s32.totalorder %s23, %s26
      %p35 = scmp.eq.s32.totalorder %s18, 1
      %p36 = por %p34, %p35
      %p37 = scmp.ne.s32.totalorder %s26, %s27
      %p38 = scmp.eq.s32.totalorder %s18, 0
      %p39 = por %p37, %p38
      %p40 = scmp.ne.s32.totalorder %s26, %s27
      %p41 = scmp.eq.s32.totalorder %s19, 1
      %p42 = por %p40, %p41
      %p44 = scmp.ne.s32.totalorder %s27, %s43
      %p45 = scmp.eq.s32.totalorder %s19, 0
      %p46 = por %p44, %p45
      %s47 = ssub.s32 %s13, %s20
      %p48 = scmp.eq.s32.totalorder %s47, 0
      %s50 = sadd.s32 %s49, 1
      %s51 = scalar_select %p48, %s49, %s50
      %p54 = pneg %p48
      %p55 = scmp.eq.s32.totalorder %s13, 1
      %p56 = por %p54, %p55
      %p57 = scmp.ne.s32.totalorder %s49, %s52
      %p58 = scmp.eq.s32.totalorder %s13, 0
      %p59 = por %p57, %p58
      %p60 = scmp.ne.s32.totalorder %s49, %s52
      %p61 = scmp.eq.s32.totalorder %s18, 1
      %p62 = por %p60, %p61
      %p63 = scmp.ne.s32.totalorder %s52, %s53
      %p64 = scmp.eq.s32.totalorder %s18, 0
      %p65 = por %p63, %p64
      %p66 = scmp.ne.s32.totalorder %s52, %s53
      %p67 = scmp.eq.s32.totalorder %s19, 1
      %p68 = por %p66, %p67
      %p70 = scmp.ne.s32.totalorder %s53, %s69
      %p71 = scmp.eq.s32.totalorder %s19, 0
      %p72 = por %p70, %p71
      %p73 = scmp.le.s32.totalorder 1, %s13
      %p74 = scmp.lt.s32.totalorder %s13, 3
      %p75 = pnand %p73, %p74
      %p76 = pneg %p75
      // Predicated region
      $region9: #{tpu_custom_call.1} parent=5 // pred_check
        _
      $region10: #{tpu_custom_call.1} parent=5 // pred_check_branch
        %78 = sbr.rel (%p75) target = $region12
      $region11: #{tpu_custom_call.1} parent=5 // pred_region
        %s79 = ssub.s32 %s13, 1
      $region12: #{tpu_custom_call.1} parent=5 // pred_fallthru
        _
      %p80 = scmp.lt.s32.totalorder %s13, 2
      // Predicated region
      $region13: #{tpu_custom_call.1} parent=5 // pred_check
        %p81 = pneg %p80
      $region14: #{tpu_custom_call.1} parent=5 // pred_check_branch
        %83 = sbr.rel (%p81) target = $region16
      $region15: #{tpu_custom_call.1} parent=5 // pred_region
        // Predicated region
        $region17: #{tpu_custom_call.1} parent=15 // pred_check
          %p84 = pneg %p33
        $region18: #{tpu_custom_call.1} parent=15 // pred_check_branch
          %86 = sbr.rel (%p84) target = $region20
        $region19: #{tpu_custom_call.1} parent=15 // pred_region
          %s87 = sand.u32 %s23, 1
          %s88 = scalar_lea.sflag [#allocation3], %s87
          %s89 = sand.u32 %s23, 1
          %s90 = smul.addr %s89, 64
          %s91 = scalar_lea.vmem [#allocation2], %s90
          %s92 = smul.u32 4, %s13
          %s94 = ssub.s32 1024, 1024
          %95 = vsyncadd %s88, %s94
          %s96 = smul.addr %s92, 2
          %s97 = smul.addr %s96, 128
          %s98 = scalar_lea.hbm %s0, %s97
          %s99 = sshll.u32 %s91, 4
          %s100 = int_to_ptr.vmem [resolvable:$true] %s99
          %105 = dma.hbm_to_vmem [thread:$0]  %s98, 1024, %s100, %s88, 128, 128, 8
        $region20: #{tpu_custom_call.1} parent=15 // pred_fallthru
          _
      $region16: #{tpu_custom_call.1} parent=5 // pred_fallthru
        _
      %p106 = scmp.le.s32.totalorder 1, %s13
      %p107 = scmp.lt.s32.totalorder %s13, 3
      %p108 = pnand %p106, %p107
      %p109 = pneg %p108
      // Predicated region
      $region21: #{tpu_custom_call.1} parent=5 // pred_check
        _
      $region22: #{tpu_custom_call.1} parent=5 // pred_check_branch
        %111 = sbr.rel (%p108) target = $region24
      $region23: #{tpu_custom_call.1} parent=5 // pred_region
        %s112 = ssub.s32 %s13, 1
        %s113 = sand.u32 %s26, 1
        %s114 = scalar_lea.sflag [#allocation3], %s113
        %s115 = sand.u32 %s26, 1
        %s116 = smul.addr %s115, 64
        %s117 = scalar_lea.vmem [#allocation2], %s116
        // Predicated region
        $region25: #{tpu_custom_call.1} parent=23 // pred_check
          %p118 = pneg %p39
        $region26: #{tpu_custom_call.1} parent=23 // pred_check_branch
          %120 = sbr.rel (%p118) target = $region28
        $region27: #{tpu_custom_call.1} parent=23 // pred_region
          %121 = dma.done %s114, 1024
        $region28: #{tpu_custom_call.1} parent=23 // pred_fallthru
          _
        %s122 = sand.u32 %s26, 1
        %s123 = scalar_lea.sflag [#allocation3], %s122
        %s124 = sand.u32 %s26, 1
        %s125 = smul.addr %s124, 64
        %s126 = scalar_lea.vmem [#allocation2], %s125
        %p127 = pneg %p39
        %p128 = pneg %p36
        %p129 = pneg %p65
        %p130 = pneg %p62
        %s131 = sand.u32 %s52, 1
        %s132 = scalar_lea.sflag [#allocation4], %s131
        %s133 = sand.u32 %s52, 1
        %s134 = smul.addr %s133, 64
        %s135 = scalar_lea.vmem [#allocation5], %s134
        %s136 = smul.u32 4, %s18
        %s137 = smul.u32 4, %s18
        %v138 = vld [vmem:[%s117] sm:$0xff]
        %v139 = vld [vmem:[%s117 + $0x8] sm:$0xff]
        %v140 = vld [vmem:[%s117 + $0x10] sm:$0xff]
        %v141 = vld [vmem:[%s117 + $0x18] sm:$0xff]
        %v142 = vld [vmem:[%s117 + $0x20] sm:$0xff]
        %v143 = vld [vmem:[%s117 + $0x28] sm:$0xff]
        %v144 = vld [vmem:[%s117 + $0x30] sm:$0xff]
        %v145 = vld [vmem:[%s117 + $0x38] sm:$0xff]
        %154 = vrot.lane.b32.xlu0 %v138, 127
        %v155 = vpop.permute.xlu0 %154
        %156 = vrot.lane.b32.xlu0 %v139, 127
        %v157 = vpop.permute.xlu0 %156
        %158 = vrot.lane.b32.xlu0 %v140, 127
        %v159 = vpop.permute.xlu0 %158
        %160 = vrot.lane.b32.xlu0 %v141, 127
        %v161 = vpop.permute.xlu0 %160
        %162 = vrot.lane.b32.xlu0 %v142, 127
        %v163 = vpop.permute.xlu0 %162
        %164 = vrot.lane.b32.xlu0 %v143, 127
        %v165 = vpop.permute.xlu0 %164
        %166 = vrot.lane.b32.xlu0 %v144, 127
        %v167 = vpop.permute.xlu0 %166
        %168 = vrot.lane.b32.xlu0 %v145, 127
        %v169 = vpop.permute.xlu0 %168
        %v178 = vmax.f32 %v138, %v155
        %v179 = vmax.f32 %v139, %v157
        %v180 = vmax.f32 %v140, %v159
        %v181 = vmax.f32 %v141, %v161
        %v182 = vmax.f32 %v142, %v163
        %v183 = vmax.f32 %v143, %v165
        %v184 = vmax.f32 %v144, %v167
        %v185 = vmax.f32 %v145, %v169
        %vm186 = vcmask 121856
        %187 = vst.msk [vmem:[%s135] sm:$0xff] %vm186, %v178
        %188 = vst.msk [vmem:[%s135 + $0x8] sm:$0xff] %vm186, %v179
        %189 = vst.msk [vmem:[%s135 + $0x10] sm:$0xff] %vm186, %v180
        %190 = vst.msk [vmem:[%s135 + $0x18] sm:$0xff] %vm186, %v181
        %191 = vst.msk [vmem:[%s135 + $0x20] sm:$0xff] %vm186, %v182
        %192 = vst.msk [vmem:[%s135 + $0x28] sm:$0xff] %vm186, %v183
        %193 = vst.msk [vmem:[%s135 + $0x30] sm:$0xff] %vm186, %v184
        %194 = vst.msk [vmem:[%s135 + $0x38] sm:$0xff] %vm186, %v185
        %v195 = vld [vmem:[%s117] sm:$0xff]
        %v196 = vld [vmem:[%s117 + $0x8] sm:$0xff]
        %v197 = vld [vmem:[%s117 + $0x10] sm:$0xff]
        %v198 = vld [vmem:[%s117 + $0x18] sm:$0xff]
        %v199 = vld [vmem:[%s117 + $0x20] sm:$0xff]
        %v200 = vld [vmem:[%s117 + $0x28] sm:$0xff]
        %v201 = vld [vmem:[%s117 + $0x30] sm:$0xff]
        %v202 = vld [vmem:[%s117 + $0x38] sm:$0xff]
        %vm203 = vcmask 130168
        %204 = vst.msk [vmem:[%s135] sm:$0xff] %vm203, %v195
        %205 = vst.msk [vmem:[%s135 + $0x8] sm:$0xff] %vm203, %v196
        %206 = vst.msk [vmem:[%s135 + $0x10] sm:$0xff] %vm203, %v197
        %207 = vst.msk [vmem:[%s135 + $0x18] sm:$0xff] %vm203, %v198
        %208 = vst.msk [vmem:[%s135 + $0x20] sm:$0xff] %vm203, %v199
        %209 = vst.msk [vmem:[%s135 + $0x28] sm:$0xff] %vm203, %v200
        %210 = vst.msk [vmem:[%s135 + $0x30] sm:$0xff] %vm203, %v201
        %211 = vst.msk [vmem:[%s135 + $0x38] sm:$0xff] %vm203, %v202
        %v212 = vld [vmem:[%s135] sm:$0xff]
        %v213 = vld [vmem:[%s135 + $0x8] sm:$0x7f]
        %v214 = vld [vmem:[%s135 + $0x10] sm:$0xff]
        %v215 = vld [vmem:[%s135 + $0x18] sm:$0x7f]
        %v216 = vld [vmem:[%s135 + $0x20] sm:$0xff]
        %v217 = vld [vmem:[%s135 + $0x28] sm:$0x7f]
        %v218 = vld [vmem:[%s135 + $0x30] sm:$0xff]
        %v219 = vld [vmem:[%s135 + $0x38] sm:$0x7f]
        %v220 = vld [vmem:[%s135 + $0x1] sm:$0xff]
        %v221 = vld [vmem:[%s135 + $0x9] sm:$0x7f]
        %v222 = vld [vmem:[%s135 + $0x11] sm:$0xff]
        %v223 = vld [vmem:[%s135 + $0x19] sm:$0x7f]
        %v224 = vld [vmem:[%s135 + $0x21] sm:$0xff]
        %v225 = vld [vmem:[%s135 + $0x29] sm:$0x7f]
        %v226 = vld [vmem:[%s135 + $0x31] sm:$0xff]
        %v227 = vld [vmem:[%s135 + $0x39] sm:$0x7f]
        %v228 = vmax.f32 %v212, %v220
        %v229 = vmax.f32 %v213, %v221
        %v230 = vmax.f32 %v214, %v222
        %v231 = vmax.f32 %v215, %v223
        %v232 = vmax.f32 %v216, %v224
        %v233 = vmax.f32 %v217, %v225
        %v234 = vmax.f32 %v218, %v226
        %v235 = vmax.f32 %v219, %v227
        %vm236 = vcmask 130048
        %237 = vst.msk [vmem:[%s135] sm:$0xff] %vm236, %v228
        %vm238 = vcmask 129024
        %239 = vst.msk [vmem:[%s135 + $0x8] sm:$0x7f] %vm238, %v229
        %240 = vst.msk [vmem:[%s135 + $0x10] sm:$0xff] %vm236, %v230
        %241 = vst.msk [vmem:[%s135 + $0x18] sm:$0x7f] %vm238, %v231
        %242 = vst.msk [vmem:[%s135 + $0x20] sm:$0xff] %vm236, %v232
        %243 = vst.msk [vmem:[%s135 + $0x28] sm:$0x7f] %vm238, %v233
        %244 = vst.msk [vmem:[%s135 + $0x30] sm:$0xff] %vm236, %v234
        %245 = vst.msk [vmem:[%s135 + $0x38] sm:$0x7f] %vm238, %v235
        %s246 = sand.u32 %s52, 1
        %s247 = scalar_lea.sflag [#allocation4], %s246
        %s248 = sand.u32 %s52, 1
        %s249 = smul.addr %s248, 64
        %s250 = scalar_lea.vmem [#allocation5], %s249
        // Predicated region
        $region29: #{tpu_custom_call.1} parent=23 // pred_check
          %p251 = pneg %p62
        $region30: #{tpu_custom_call.1} parent=23 // pred_check_branch
          %253 = sbr.rel (%p251) target = $region32
        $region31: #{tpu_custom_call.1} parent=23 // pred_region
          %s254 = smul.u32 4, %s18
          %s256 = ssub.s32 1024, 1024
          %257 = vsyncadd %s247, %s256
          %s258 = smul.addr %s254, 2
          %s259 = smul.addr %s258, 128
          %s260 = scalar_lea.hbm %s1, %s259
          %s261 = sshll.u32 %s250, 4
          %s262 = int_to_ptr.vmem [resolvable:$true] %s261
          %267 = dma.vmem_to_hbm [thread:$0]  %s262, 1024, %s260, %s247, 128, 128, 8
        $region32: #{tpu_custom_call.1} parent=23 // pred_fallthru
          _
      $region24: #{tpu_custom_call.1} parent=5 // pred_fallthru
        _
      %p268 = scmp.le.s32.totalorder 2, %s13
      // Predicated region
      $region33: #{tpu_custom_call.1} parent=5 // pred_check
        %p269 = pneg %p268
      $region34: #{tpu_custom_call.1} parent=5 // pred_check_branch
        %271 = sbr.rel (%p269) target = $region36
      $region35: #{tpu_custom_call.1} parent=5 // pred_region
        %s272 = ssub.s32 %s13, 2
        // Predicated region
        $region37: #{tpu_custom_call.1} parent=35 // pred_check
          %p273 = pneg %p68
        $region38: #{tpu_custom_call.1} parent=35 // pred_check_branch
          %275 = sbr.rel (%p273) target = $region40
        $region39: #{tpu_custom_call.1} parent=35 // pred_region
          %s276 = sand.u32 %s53, 1
          %s277 = scalar_lea.sflag [#allocation4], %s276
          %s278 = sand.u32 %s53, 1
          %s279 = smul.addr %s278, 64
          %s280 = scalar_lea.vmem [#allocation5], %s279
          %281 = dma.done %s277, 1024
        $region40: #{tpu_custom_call.1} parent=35 // pred_fallthru
          _
      $region36: #{tpu_custom_call.1} parent=5 // pred_fallthru
        _
    $region6: #{tpu_custom_call.1} parent=1 // loop_footer
      %s17 = sadd.s32 1, %s13
    $region7: #{tpu_custom_call.1} parent=1 // loop_footer_branch
      %12 = sbr.rel target = $region3
    $region8: #{tpu_custom_call.1} parent=1 // loop_exit
      _
    %282 = vsyncpa [#allocation3], 1
    %s283 = scalar_lea.sflag [#allocation3], 1
    %284 = vsyncpa %s283, 1
    %285 = vsyncpa [#allocation4], 1
    %s286 = scalar_lea.sflag [#allocation4], 1
    %287 = vsyncpa %s286, 1

</llo_original>
